<compile_context>
chip_gen: v5e
topology: v5e:2x2
jax: 0.10.0
libtpu: 0.0.40
codegen_flags: <defaults>
</compile_context>

<pallas_src>
import functools
import math

import jax
import jax.numpy as jnp
from jax import lax
from jax.experimental import pallas as pl
from jax.experimental.pallas import tpu as pltpu

_LOG_2PI = math.log(2.0 * math.pi)
_HIDDEN = 64
_FUSED = 2 * _HIDDEN   # 128: lane-full fused hidden width and output-slab width


def _round_up(x, m):
    return (x + m - 1) // m * m


# ---------------------------------------------------------------------------
# Kernel
# ---------------------------------------------------------------------------
def _actor_critic_kernel(x_ref, act_ref, var_ref,
                         w1_ref, b1_ref, w2_ref, b2_ref, w3_ref, b3_ref,
                         out_ref, *, action_dim):
    x = x_ref[...]                                                  # (TB, D)

    # Fused actor|critic layers 1 and 2: one lane-full matmul each.
    h1 = jnp.tanh(jnp.dot(x, w1_ref[...], preferred_element_type=jnp.float32)
                  + b1_ref[...])                                    # (TB, 128)
    h2 = jnp.tanh(jnp.dot(h1, w2_ref[...], preferred_element_type=jnp.float32)
                  + b2_ref[...])                                    # (TB, 128)

    # Fused head: cols [0:A) = action_mean, col A = state_value, rest exactly 0.
    head = (jnp.dot(h2, w3_ref[...], preferred_element_type=jnp.float32)
            + b3_ref[...])                                          # (TB, 128)

    # Diagonal MultivariateNormal log_prob(action).
    var = var_ref[...]                                              # (1, 128), padded with 1s
    inv_var = 1.0 / var                                             # once per tile (128 lanes)
    logdet = jnp.sum(jnp.log(var), axis=-1, keepdims=True)          # (1, 1); log(1)=0 in padding

    a = act_ref[...]                                                # (TB, 128), zeros beyond A
    col = lax.broadcasted_iota(jnp.int32, head.shape, 1)
    diff = a - head
    quad = jnp.sum(jnp.where(col < action_dim, diff * diff * inv_var, 0.0),
                   axis=-1, keepdims=True)                          # (TB, 1)
    logp = -0.5 * (quad + action_dim * _LOG_2PI + logdet)           # (TB, 1)

    # Single lane-dense output slab: mean | value | logp | zero padding.
    out_ref[...] = jnp.where(col == action_dim + 1, logp, head)


# ---------------------------------------------------------------------------
# Parameter packing (do this ONCE; reuse the packed arrays across calls)
# ---------------------------------------------------------------------------
def pack_actor_critic_params(params, action_dim, hidden=_HIDDEN):
    assert 2 * hidden == _FUSED, "fusion assumes hidden width 64"
    assert action_dim + 2 <= _FUSED
    f32 = jnp.float32

    w1 = jnp.concatenate([params["aw1"], params["cw1"]], axis=1).astype(f32)   # (D, 128)
    b1 = jnp.concatenate([params["ab1"], params["cb1"]], axis=1).astype(f32)   # (1, 128)

    w2 = jnp.zeros((_FUSED, _FUSED), f32)                                      # block-diagonal
    w2 = w2.at[:hidden, :hidden].set(params["aw2"])
    w2 = w2.at[hidden:, hidden:].set(params["cw2"])
    b2 = jnp.concatenate([params["ab2"], params["cb2"]], axis=1).astype(f32)   # (1, 128)

    w3 = jnp.zeros((_FUSED, _FUSED), f32)                                      # zero-padded head
    w3 = w3.at[:hidden, :action_dim].set(params["aw3"])
    w3 = w3.at[hidden:, action_dim].set(params["cw3"][:, 0])
    b3 = jnp.zeros((1, _FUSED), f32)
    b3 = b3.at[0, :action_dim].set(params["ab3"][0])
    b3 = b3.at[0, action_dim].set(params["cb3"][0, 0])

    return dict(w1=w1, b1=b1, w2=w2, b2=b2, w3=w3, b3=b3)


# ---------------------------------------------------------------------------
# Wrapper: mirrors ActorCritic.evaluate (continuous)
# ---------------------------------------------------------------------------
@functools.partial(jax.jit, static_argnames=("action_dim", "block_rows"))
def actor_critic_evaluate(state_subgoal, action, action_var, packed, *,
                          action_dim, block_rows=512):
    """Returns (action_logprobs [B], state_values [B,1], dist_entropy [B], action_mean [B,A])."""
    B, D = state_subgoal.shape
    A = action_dim

    # Batch tile: multiple of 8 sublanes, capped so double-buffered tiles fit
    # comfortably inside v7x's tighter (32 MiB scoped / 64 MiB physical) VMEM.
    TB = min(block_rows, _round_up(B, 8))
    B_pad = _round_up(B, TB)

    x = jnp.zeros((B_pad, D), jnp.float32).at[:B].set(state_subgoal.astype(jnp.float32))
    a = jnp.zeros((B_pad, _FUSED), jnp.float32).at[:B, :A].set(action.astype(jnp.float32))
    var = jnp.ones((1, _FUSED), jnp.float32).at[0, :A].set(action_var.astype(jnp.float32))

    flops = 2 * B_pad * (D * _FUSED + 2 * _FUSED * _FUSED)
    cost = pl.CostEstimate(
        flops=flops,
        transcendentals=2 * B_pad * _FUSED,                       # tanh
        bytes_accessed=4 * (B_pad * (D + 3 * _FUSED)
                            + D * _FUSED + 2 * _FUSED * _FUSED + 4 * _FUSED),
    )

    out = pl.pallas_call(
        functools.partial(_actor_critic_kernel, action_dim=A),
        out_shape=jax.ShapeDtypeStruct((B_pad, _FUSED), jnp.float32),
        grid=(B_pad // TB,),
        in_specs=[
            pl.BlockSpec((TB, D), lambda i: (i, 0)),              # state_subgoal tile
            pl.BlockSpec((TB, _FUSED), lambda i: (i, 0)),         # action tile (lane-padded)
            pl.BlockSpec((1, _FUSED), lambda i: (0, 0)),          # action_var (resident)
            pl.BlockSpec((D, _FUSED), lambda i: (0, 0)),          # fused W1 (resident)
            pl.BlockSpec((1, _FUSED), lambda i: (0, 0)),          # fused b1
            pl.BlockSpec((_FUSED, _FUSED), lambda i: (0, 0)),     # block-diag W2
            pl.BlockSpec((1, _FUSED), lambda i: (0, 0)),          # fused b2
            pl.BlockSpec((_FUSED, _FUSED), lambda i: (0, 0)),     # padded head W3
            pl.BlockSpec((1, _FUSED), lambda i: (0, 0)),          # padded head b3
        ],
        out_specs=pl.BlockSpec((TB, _FUSED), lambda i: (i, 0)),   # lane-dense output slab
        compiler_params=pltpu.CompilerParams(
            dimension_semantics=("parallel",)),
        cost_estimate=cost,
    )(x, a, var,
      packed["w1"], packed["b1"], packed["w2"], packed["b2"],
      packed["w3"], packed["b3"])

    action_mean = out[:B, :A]
    state_values = out[:B, A:A + 1]
    action_logprobs = out[:B, A + 1]

    # Entropy depends only on action_var -> hoisted out of the kernel entirely.
    ent = 0.5 * A * (1.0 + _LOG_2PI) + 0.5 * jnp.sum(jnp.log(action_var.astype(jnp.float32)))
    dist_entropy = jnp.broadcast_to(ent, (B,))

    return action_logprobs, state_values, dist_entropy, action_mean


# ---------------------------------------------------------------------------
# Init (PyTorch nn.Linear-style uniform init), pure-JAX reference for checking
# ---------------------------------------------------------------------------
def _linear_params(key, fan_in, fan_out):
    kw, kb = jax.random.split(key)
    bound = 1.0 / math.sqrt(fan_in)
    w = jax.random.uniform(kw, (fan_in, fan_out), jnp.float32, -bound, bound)
    b = jax.random.uniform(kb, (1, fan_out), jnp.float32, -bound, bound)
    return w, b


def init_actor_critic_params(key, state_dim, subgoal_dim, action_dim, hidden=_HIDDEN):
    d_in = state_dim + subgoal_dim
    keys = jax.random.split(key, 6)
    aw1, ab1 = _linear_params(keys[0], d_in, hidden)
    aw2, ab2 = _linear_params(keys[1], hidden, hidden)
    aw3, ab3 = _linear_params(keys[2], hidden, action_dim)
    cw1, cb1 = _linear_params(keys[3], d_in, hidden)
    cw2, cb2 = _linear_params(keys[4], hidden, hidden)
    cw3, cb3 = _linear_params(keys[5], hidden, 1)
    return dict(aw1=aw1, ab1=ab1, aw2=aw2, ab2=ab2, aw3=aw3, ab3=ab3,
                cw1=cw1, cb1=cb1, cw2=cw2, cb2=cb2, cw3=cw3, cb3=cb3)


def _reference_evaluate(x, action, action_var, params):
    h = jnp.tanh(x @ params["aw1"] + params["ab1"])
    h = jnp.tanh(h @ params["aw2"] + params["ab2"])
    mean = h @ params["aw3"] + params["ab3"]
    c = jnp.tanh(x @ params["cw1"] + params["cb1"])
    c = jnp.tanh(c @ params["cw2"] + params["cb2"])
    value = c @ params["cw3"] + params["cb3"]
    A = action.shape[-1]
    diff = action - mean
    logdet = jnp.sum(jnp.log(action_var))
    quad = jnp.sum(diff * diff / action_var, axis=-1)
    logp = -0.5 * (quad + A * _LOG_2PI + logdet)
    ent = 0.5 * A * (1.0 + _LOG_2PI) + 0.5 * logdet
    return logp, value, jnp.broadcast_to(ent, (x.shape[0],)), mean


if __name__ == "__main__":
    state_dim, subgoal_dim, action_dim = 12, 4, 4
    action_std_init = 0.6
    B = 8

    key = jax.random.PRNGKey(0)
    k_params, k_state, k_action = jax.random.split(key, 3)

    params = init_actor_critic_params(k_params, state_dim, subgoal_dim, action_dim)
    packed = pack_actor_critic_params(params, action_dim)   # pack ONCE, reuse per call

    action_var = jnp.full((action_dim,), action_std_init * action_std_init, jnp.float32)
    state_subgoal = jax.random.normal(k_state, (B, state_dim + subgoal_dim), jnp.float32)
    action = jax.random.normal(k_action, (B, action_dim), jnp.float32)

    logp, values, entropy, action_mean = jax.block_until_ready(
        actor_critic_evaluate(state_subgoal, action, action_var, packed,
                              action_dim=action_dim)
    )

    # Correctness check of the fused (block-diagonal) kernel vs. the unfused reference.
    r_logp, r_values, r_entropy, r_mean = _reference_evaluate(
        state_subgoal, action, action_var, params)

    assert logp.shape == (B,)
    assert values.shape == (B, 1)
    assert entropy.shape == (B,)
    assert action_mean.shape == (B, action_dim)
    assert jnp.allclose(action_mean, r_mean, atol=1e-4, rtol=1e-4)
    assert jnp.allclose(values, r_values, atol=1e-4, rtol=1e-4)
    assert jnp.allclose(logp, r_logp, atol=1e-4, rtol=1e-4)
    assert jnp.allclose(entropy, r_entropy, atol=1e-5, rtol=1e-5)

    print("KERNEL_OK")
</pallas_src>

<mosaic_0001>
module attributes {stable_mosaic.version = 11 : i64} {
  func.func @_actor_critic_kernel(%arg0: i32, %arg1: memref<8x16xf32, #tpu.memory_space<vmem>>, %arg2: memref<8x128xf32, #tpu.memory_space<vmem>>, %arg3: memref<1x128xf32, #tpu.memory_space<vmem>>, %arg4: memref<16x128xf32, #tpu.memory_space<vmem>>, %arg5: memref<1x128xf32, #tpu.memory_space<vmem>>, %arg6: memref<128x128xf32, #tpu.memory_space<vmem>>, %arg7: memref<1x128xf32, #tpu.memory_space<vmem>>, %arg8: memref<128x128xf32, #tpu.memory_space<vmem>>, %arg9: memref<1x128xf32, #tpu.memory_space<vmem>>, %arg10: memref<8x128xf32, #tpu.memory_space<vmem>>) attributes {dimension_semantics = [#tpu.dimension_semantics<parallel>], iteration_bounds = array<i64: 1>, scalar_prefetch = 0 : i64, scratch_operands = 0 : i64, tpu.core_type = #tpu.core_type<tc>, window_params = [{transform_indices = @transform_0, window_bounds = array<i64: 8, 16>}, {transform_indices = @transform_1, window_bounds = array<i64: 8, 128>}, {pipeline_mode = #tpu.pipeline_mode<synchronous>, transform_indices = @transform_2, window_bounds = array<i64: 1, 128>}, {pipeline_mode = #tpu.pipeline_mode<synchronous>, transform_indices = @transform_3, window_bounds = array<i64: 16, 128>}, {pipeline_mode = #tpu.pipeline_mode<synchronous>, transform_indices = @transform_4, window_bounds = array<i64: 1, 128>}, {pipeline_mode = #tpu.pipeline_mode<synchronous>, transform_indices = @transform_5, window_bounds = array<i64: 128, 128>}, {pipeline_mode = #tpu.pipeline_mode<synchronous>, transform_indices = @transform_6, window_bounds = array<i64: 1, 128>}, {pipeline_mode = #tpu.pipeline_mode<synchronous>, transform_indices = @transform_7, window_bounds = array<i64: 128, 128>}, {pipeline_mode = #tpu.pipeline_mode<synchronous>, transform_indices = @transform_8, window_bounds = array<i64: 1, 128>}, {transform_indices = @transform_9, window_bounds = array<i64: 8, 128>}]} {
    %c0 = arith.constant 0 : index
    %c0_0 = arith.constant 0 : index
    %0 = vector.load %arg1[%c0, %c0_0] : memref<8x16xf32, #tpu.memory_space<vmem>>, vector<8x16xf32>
    %c0_1 = arith.constant 0 : index
    %c0_2 = arith.constant 0 : index
    %1 = vector.load %arg4[%c0_1, %c0_2] : memref<16x128xf32, #tpu.memory_space<vmem>>, vector<16x128xf32>
    %cst = arith.constant dense<0.000000e+00> : vector<8x128xf32>
    %2 = tpu.matmul %0, %1, %cst {dimension_numbers = #tpu.dot_dimension_numbers<[1], [0], [0], [1], [0, 0, 1, 1], [], []>} : vector<8x16xf32>, vector<16x128xf32>, vector<8x128xf32> -> vector<8x128xf32>
    %c0_3 = arith.constant 0 : index
    %c0_4 = arith.constant 0 : index
    %3 = vector.load %arg5[%c0_3, %c0_4] : memref<1x128xf32, #tpu.memory_space<vmem>>, vector<1x128xf32>
    %4 = vector.broadcast %3 : vector<1x128xf32> to vector<8x128xf32>
    %5 = arith.addf %2, %4 : vector<8x128xf32>
    %6 = math.tanh %5 : vector<8x128xf32>
    %c0_5 = arith.constant 0 : index
    %c0_6 = arith.constant 0 : index
    %7 = vector.load %arg6[%c0_5, %c0_6] : memref<128x128xf32, #tpu.memory_space<vmem>>, vector<128x128xf32>
    %cst_7 = arith.constant dense<0.000000e+00> : vector<8x128xf32>
    %8 = tpu.matmul %6, %7, %cst_7 {dimension_numbers = #tpu.dot_dimension_numbers<[1], [0], [0], [1], [0, 0, 1, 1], [], []>} : vector<8x128xf32>, vector<128x128xf32>, vector<8x128xf32> -> vector<8x128xf32>
    %c0_8 = arith.constant 0 : index
    %c0_9 = arith.constant 0 : index
    %9 = vector.load %arg7[%c0_8, %c0_9] : memref<1x128xf32, #tpu.memory_space<vmem>>, vector<1x128xf32>
    %10 = vector.broadcast %9 : vector<1x128xf32> to vector<8x128xf32>
    %11 = arith.addf %8, %10 : vector<8x128xf32>
    %12 = math.tanh %11 : vector<8x128xf32>
    %c0_10 = arith.constant 0 : index
    %c0_11 = arith.constant 0 : index
    %13 = vector.load %arg8[%c0_10, %c0_11] : memref<128x128xf32, #tpu.memory_space<vmem>>, vector<128x128xf32>
    %cst_12 = arith.constant dense<0.000000e+00> : vector<8x128xf32>
    %14 = tpu.matmul %12, %13, %cst_12 {dimension_numbers = #tpu.dot_dimension_numbers<[1], [0], [0], [1], [0, 0, 1, 1], [], []>} : vector<8x128xf32>, vector<128x128xf32>, vector<8x128xf32> -> vector<8x128xf32>
    %c0_13 = arith.constant 0 : index
    %c0_14 = arith.constant 0 : index
    %15 = vector.load %arg9[%c0_13, %c0_14] : memref<1x128xf32, #tpu.memory_space<vmem>>, vector<1x128xf32>
    %16 = vector.broadcast %15 : vector<1x128xf32> to vector<8x128xf32>
    %17 = arith.addf %14, %16 : vector<8x128xf32>
    %c0_15 = arith.constant 0 : index
    %c0_16 = arith.constant 0 : index
    %18 = vector.load %arg3[%c0_15, %c0_16] : memref<1x128xf32, #tpu.memory_space<vmem>>, vector<1x128xf32>
    %cst_17 = arith.constant 1.000000e+00 : f32
    %19 = vector.broadcast %cst_17 : f32 to vector<1x128xf32>
    %20 = arith.divf %19, %18 : vector<1x128xf32>
    %21 = math.log %18 : vector<1x128xf32>
    %cst_18 = arith.constant dense<0.000000e+00> : vector<1xf32>
    %22 = vector.multi_reduction <add>, %21, %cst_18 [1] : vector<1x128xf32> to vector<1xf32>
    %23 = vector.shape_cast %22 : vector<1xf32> to vector<1x1xf32>
    %c0_19 = arith.constant 0 : index
    %c0_20 = arith.constant 0 : index
    %24 = vector.load %arg2[%c0_19, %c0_20] : memref<8x128xf32, #tpu.memory_space<vmem>>, vector<8x128xf32>
    %25 = tpu.iota {dimensions = array<i32: 1>} : vector<8x128xi32>
    %26 = arith.subf %24, %17 : vector<8x128xf32>
    %c4_i32 = arith.constant 4 : i32
    %27 = vector.broadcast %c4_i32 : i32 to vector<8x128xi32>
    %28 = arith.cmpi slt, %25, %27 : vector<8x128xi32>
    %29 = arith.mulf %26, %26 : vector<8x128xf32>
    %30 = vector.broadcast %20 : vector<1x128xf32> to vector<8x128xf32>
    %31 = arith.mulf %29, %30 : vector<8x128xf32>
    %cst_21 = arith.constant 0.000000e+00 : f32
    %32 = vector.broadcast %cst_21 : f32 to vector<8x128xf32>
    %33 = arith.select %28, %31, %32 : vector<8x128xi1>, vector<8x128xf32>
    %cst_22 = arith.constant dense<0.000000e+00> : vector<8xf32>
    %34 = vector.multi_reduction <add>, %33, %cst_22 [1] : vector<8x128xf32> to vector<8xf32>
    %35 = vector.shape_cast %34 : vector<8xf32> to vector<8x1xf32>
    %cst_23 = arith.constant 7.35150814 : f32
    %36 = vector.broadcast %cst_23 : f32 to vector<8x1xf32>
    %37 = arith.addf %35, %36 : vector<8x1xf32>
    %38 = vector.broadcast %23 : vector<1x1xf32> to vector<8x1xf32>
    %39 = arith.addf %37, %38 : vector<8x1xf32>
    %cst_24 = arith.constant -5.000000e-01 : f32
    %40 = vector.broadcast %cst_24 : f32 to vector<8x1xf32>
    %41 = arith.mulf %40, %39 : vector<8x1xf32>
    %c5_i32 = arith.constant 5 : i32
    %42 = vector.broadcast %c5_i32 : i32 to vector<8x128xi32>
    %43 = arith.cmpi eq, %25, %42 : vector<8x128xi32>
    %44 = vector.shape_cast %41 : vector<8x1xf32> to vector<8x1xf32>
    %45 = vector.broadcast %44 : vector<8x1xf32> to vector<8x128xf32>
    %46 = arith.select %43, %45, %17 : vector<8x128xi1>, vector<8x128xf32>
    %c0_25 = arith.constant 0 : index
    %c0_26 = arith.constant 0 : index
    %47 = vector.load %arg10[%c0_25, %c0_26] : memref<8x128xf32, #tpu.memory_space<vmem>>, vector<8x128xf32>
    tpu.vector_store %arg10[%c0_25, %c0_26], %46 {strides = array<i32>} : memref<8x128xf32, #tpu.memory_space<vmem>>, vector<8x128xf32>,
    return
  }
  func.func @transform_0(%arg0: i32) -> (i32, i32) {
    %c0_i32 = arith.constant 0 : i32
    %c0_i32_0 = arith.constant 0 : i32
    return %arg0, %c0_i32 : i32, i32
  }
  func.func @transform_1(%arg0: i32) -> (i32, i32) {
    %c0_i32 = arith.constant 0 : i32
    %c0_i32_0 = arith.constant 0 : i32
    return %arg0, %c0_i32 : i32, i32
  }
  func.func @transform_2(%arg0: i32) -> (i32, i32) {
    %c0_i32 = arith.constant 0 : i32
    %c0_i32_0 = arith.constant 0 : i32
    %c0_i32_1 = arith.constant 0 : i32
    return %c0_i32, %c0_i32_0 : i32, i32
  }
  func.func @transform_3(%arg0: i32) -> (i32, i32) {
    %c0_i32 = arith.constant 0 : i32
    %c0_i32_0 = arith.constant 0 : i32
    %c0_i32_1 = arith.constant 0 : i32
    return %c0_i32, %c0_i32_0 : i32, i32
  }
  func.func @transform_4(%arg0: i32) -> (i32, i32) {
    %c0_i32 = arith.constant 0 : i32
    %c0_i32_0 = arith.constant 0 : i32
    %c0_i32_1 = arith.constant 0 : i32
    return %c0_i32, %c0_i32_0 : i32, i32
  }
  func.func @transform_5(%arg0: i32) -> (i32, i32) {
    %c0_i32 = arith.constant 0 : i32
    %c0_i32_0 = arith.constant 0 : i32
    %c0_i32_1 = arith.constant 0 : i32
    return %c0_i32, %c0_i32_0 : i32, i32
  }
  func.func @transform_6(%arg0: i32) -> (i32, i32) {
    %c0_i32 = arith.constant 0 : i32
    %c0_i32_0 = arith.constant 0 : i32
    %c0_i32_1 = arith.constant 0 : i32
    return %c0_i32, %c0_i32_0 : i32, i32
  }
  func.func @transform_7(%arg0: i32) -> (i32, i32) {
    %c0_i32 = arith.constant 0 : i32
    %c0_i32_0 = arith.constant 0 : i32
    %c0_i32_1 = arith.constant 0 : i32
    return %c0_i32, %c0_i32_0 : i32, i32
  }
  func.func @transform_8(%arg0: i32) -> (i32, i32) {
    %c0_i32 = arith.constant 0 : i32
    %c0_i32_0 = arith.constant 0 : i32
    %c0_i32_1 = arith.constant 0 : i32
    return %c0_i32, %c0_i32_0 : i32, i32
  }
  func.func @transform_9(%arg0: i32) -> (i32, i32) {
    %c0_i32 = arith.constant 0 : i32
    %c0_i32_0 = arith.constant 0 : i32
    return %arg0, %c0_i32 : i32, i32
  }
}

</mosaic_0001>

<llo_original>
// kernel: actor_critic_evaluate.1
$region0: #{actor_critic_evaluate.1}
  #allocation0 [shape = 'u32[]', space=smem, size = 0x4, offset = 0x4, fixed_abs, tag = 'smem constant byte address 0x4 - core index']
  #allocation1 [shape = 'u32[72,128]{1,0:T(1,128)}', space=vmem, size = 0x9000, scoped, tag = 'internal scratch']
  %s0 = inlined_call_operand.vmem [shape: f32[8,16], index: 0, kind: input, shape index: {}]
  %s1 = inlined_call_operand.vmem [shape: f32[8,128], index: 1, kind: input, shape index: {}]
  %s2 = inlined_call_operand.vmem [shape: f32[1,128], index: 2, kind: input, shape index: {}]
  %s3 = inlined_call_operand.vmem [shape: f32[16,128], index: 3, kind: input, shape index: {}]
  %s4 = inlined_call_operand.vmem [shape: f32[1,128], index: 4, kind: input, shape index: {}]
  %s5 = inlined_call_operand.hbm [shape: f32[128,128], index: 5, kind: input, shape index: {}]
  %s6 = inlined_call_operand.vmem [shape: f32[1,128], index: 6, kind: input, shape index: {}]
  %s7 = inlined_call_operand.hbm [shape: f32[128,128], index: 7, kind: input, shape index: {}]
  %s8 = inlined_call_operand.vmem [shape: f32[1,128], index: 8, kind: input, shape index: {}]
  %s9 = inlined_call_operand.vmem [shape: f32[8,128], index: 9, kind: output, shape index: {}]
  %s10 = sld [smem:[#allocation0]]
  $region54: #{actor_critic_evaluate.1} parent=0
    _
  %s12 = ssub.s32 1, %s10
  %s13 = scalar_select 0, %s12, %s10
  $region1: #{actor_critic_evaluate.1} parent=0
    #allocation2 [shape = 'u8[65536]{0}', space=vmem, size = 0x10000, scoped, tag = 'input window, operand 5, single buffered']
    #allocation3 [shape = 's32[1]{0}', space=sflag, size = 0x4, scoped, tag = 'scoped memory for actor_critic_evaluate.1']
    #allocation4 [shape = 'u8[65536]{0}', space=vmem, size = 0x10000, scoped, tag = 'input window, operand 7, single buffered']
    #allocation5 [shape = 's32[1]{0}', space=sflag, size = 0x4, scoped, tag = 'scoped memory for actor_critic_evaluate.1']
    %14 = vsyncpa [#allocation3], 0
    %15 = vsyncpa [#allocation5], 0
    // Predicated region
    $region2: #{actor_critic_evaluate.1} parent=1 // pred_check
      _
    $region3: #{actor_critic_evaluate.1} parent=1 // pred_check_branch
      %17 = sbr.rel (0) target = $region5
    $region4: #{actor_critic_evaluate.1} parent=1 // pred_region
      _
    $region5: #{actor_critic_evaluate.1} parent=1 // pred_fallthru
      _
    // Predicated region
    $region6: #{actor_critic_evaluate.1} parent=1 // pred_check
      _
    $region7: #{actor_critic_evaluate.1} parent=1 // pred_check_branch
      %19 = sbr.rel (0) target = $region9
    $region8: #{actor_critic_evaluate.1} parent=1 // pred_region
      _
    $region9: #{actor_critic_evaluate.1} parent=1 // pred_fallthru
      _
    // Predicated region
    $region10: #{actor_critic_evaluate.1} parent=1 // pred_check
      _
    $region11: #{actor_critic_evaluate.1} parent=1 // pred_check_branch
      %21 = sbr.rel (0) target = $region13
    $region12: #{actor_critic_evaluate.1} parent=1 // pred_region
      _
    $region13: #{actor_critic_evaluate.1} parent=1 // pred_fallthru
      _
    // Predicated region
    $region14: #{actor_critic_evaluate.1} parent=1 // pred_check
      _
    $region15: #{actor_critic_evaluate.1} parent=1 // pred_check_branch
      %23 = sbr.rel (0) target = $region17
    $region16: #{actor_critic_evaluate.1} parent=1 // pred_region
      _
    $region17: #{actor_critic_evaluate.1} parent=1 // pred_fallthru
      _
    // Predicated region
    $region18: #{actor_critic_evaluate.1} parent=1 // pred_check
      _
    $region19: #{actor_critic_evaluate.1} parent=1 // pred_check_branch
      %25 = sbr.rel (0) target = $region21
    $region20: #{actor_critic_evaluate.1} parent=1 // pred_region
      _
    $region21: #{actor_critic_evaluate.1} parent=1 // pred_fallthru
      _
    // Predicated region
    $region22: #{actor_critic_evaluate.1} parent=1 // pred_check
      _
    $region23: #{actor_critic_evaluate.1} parent=1 // pred_check_branch
      %27 = sbr.rel (0) target = $region25
    $region24: #{actor_critic_evaluate.1} parent=1 // pred_region
      %29 = vsyncadd [#allocation3], 0
      %s30 = sshll.u32 %s5, 4
      %s31 = int_to_ptr.hbm [resolvable:$true] %s30
      %s32 = sshll.u32 [#allocation2], 4
      %s33 = int_to_ptr.vmem [resolvable:$true] %s32
      %38 = dma.hbm_to_vmem [thread:$0]  %s31, 2048, %s33, [#allocation3], 128, 128, 8
    $region25: #{actor_critic_evaluate.1} parent=1 // pred_fallthru
      _
    // Predicated region
    $region26: #{actor_critic_evaluate.1} parent=1 // pred_check
      _
    $region27: #{actor_critic_evaluate.1} parent=1 // pred_check_branch
      %40 = sbr.rel (0) target = $region29
    $region28: #{actor_critic_evaluate.1} parent=1 // pred_region
      _
    $region29: #{actor_critic_evaluate.1} parent=1 // pred_fallthru
      _
    // Predicated region
    $region30: #{actor_critic_evaluate.1} parent=1 // pred_check
      _
    $region31: #{actor_critic_evaluate.1} parent=1 // pred_check_branch
      %42 = sbr.rel (0) target = $region33
    $region32: #{actor_critic_evaluate.1} parent=1 // pred_region
      %44 = vsyncadd [#allocation5], 0
      %s45 = sshll.u32 %s7, 4
      %s46 = int_to_ptr.hbm [resolvable:$true] %s45
      %s47 = sshll.u32 [#allocation4], 4
      %s48 = int_to_ptr.vmem [resolvable:$true] %s47
      %53 = dma.hbm_to_vmem [thread:$0]  %s46, 2048, %s48, [#allocation5], 128, 128, 8
    $region33: #{actor_critic_evaluate.1} parent=1 // pred_fallthru
      _
    // Predicated region
    $region34: #{actor_critic_evaluate.1} parent=1 // pred_check
      _
    $region35: #{actor_critic_evaluate.1} parent=1 // pred_check_branch
      %55 = sbr.rel (0) target = $region37
    $region36: #{actor_critic_evaluate.1} parent=1 // pred_region
      _
    $region37: #{actor_critic_evaluate.1} parent=1 // pred_fallthru
      _
    // Predicated region
    $region38: #{actor_critic_evaluate.1} parent=1 // pred_check
      _
    $region39: #{actor_critic_evaluate.1} parent=1 // pred_check_branch
      %57 = sbr.rel (0) target = $region41
    $region40: #{actor_critic_evaluate.1} parent=1 // pred_region
      %59 = dma.done [#allocation3], 2048
    $region41: #{actor_critic_evaluate.1} parent=1 // pred_fallthru
      _
    // Predicated region
    $region42: #{actor_critic_evaluate.1} parent=1 // pred_check
      _
    $region43: #{actor_critic_evaluate.1} parent=1 // pred_check_branch
      %61 = sbr.rel (0) target = $region45
    $region44: #{actor_critic_evaluate.1} parent=1 // pred_region
      %63 = dma.done [#allocation5], 2048
    $region45: #{actor_critic_evaluate.1} parent=1 // pred_fallthru
      _
    %v64 = vld [vmem:[%s0] sm:$0xff]
    %v65 = vld [vmem:[%s3] sm:$0xff]
    %v66 = vld [vmem:[%s3 + $0x8] sm:$0xff]
    %v67 = vld [vmem:[%s4] sm:$0x1]
    %v69 = vperm.slane %v67, 0
    %vm71 = vcmask 130048
    %v73 = vsel %vm71, %v64, 0
    %75 = vmatpush.msra.mxu0 0.0
    %76 = vmatpush.msra.mxu0 0.0
    %77 = vmatpush.msra.mxu0 0.0
    %78 = vmatpush.msra.mxu0 0.0
    %79 = vmatpush.msra.mxu0 0.0
    %80 = vmatpush.msra.mxu0 0.0
    %81 = vmatpush.msra.mxu0 0.0
    %82 = vmatpush.msra.mxu0 0.0
    %83 = vmatpush.msra.mxu0 0.0
    %84 = vmatpush.msra.mxu0 0.0
    %85 = vmatpush.msra.mxu0 0.0
    %86 = vmatpush.msra.mxu0 0.0
    %87 = vmatpush.msra.mxu0 0.0
    %88 = vmatpush.msra.mxu0 0.0
    %89 = vmatpush.msra.mxu0 %v66
    %90 = vmatpush.msra.mxu0 %v65
    %91 = vmatmul.f32.gmra.mxu0 %v73
    %v92 = vpop.f32.mrf.mxu0
    %v93 = vadd.f32 %v69, %v92
    %94 = vdwg.mxu0
    %v95 = vtanh.pop %v93
    %v96 = vld [vmem:[#allocation2] sm:$0xff]
    %v97 = vld [vmem:[#allocation2 + $0x8] sm:$0xff]
    %v98 = vld [vmem:[#allocation2 + $0x10] sm:$0xff]
    %v99 = vld [vmem:[#allocation2 + $0x18] sm:$0xff]
    %v100 = vld [vmem:[#allocation2 + $0x20] sm:$0xff]
    %v101 = vld [vmem:[#allocation2 + $0x28] sm:$0xff]
    %v102 = vld [vmem:[#allocation2 + $0x30] sm:$0xff]
    %v103 = vld [vmem:[#allocation2 + $0x38] sm:$0xff]
    %v104 = vld [vmem:[#allocation2 + $0x40] sm:$0xff]
    %v105 = vld [vmem:[#allocation2 + $0x48] sm:$0xff]
    %v106 = vld [vmem:[#allocation2 + $0x50] sm:$0xff]
    %v107 = vld [vmem:[#allocation2 + $0x58] sm:$0xff]
    %v108 = vld [vmem:[#allocation2 + $0x60] sm:$0xff]
    %v109 = vld [vmem:[#allocation2 + $0x68] sm:$0xff]
    %v110 = vld [vmem:[#allocation2 + $0x70] sm:$0xff]
    %v111 = vld [vmem:[#allocation2 + $0x78] sm:$0xff]
    %v112 = vld [vmem:[%s6] sm:$0x1]
    %v114 = vperm.slane %v112, 0
    %116 = vmatpush.msra.mxu0 %v111
    %117 = vmatpush.msra.mxu0 %v110
    %118 = vmatpush.msra.mxu0 %v109
    %119 = vmatpush.msra.mxu0 %v108
    %120 = vmatpush.msra.mxu0 %v107
    %121 = vmatpush.msra.mxu0 %v106
    %122 = vmatpush.msra.mxu0 %v105
    %123 = vmatpush.msra.mxu0 %v104
    %124 = vmatpush.msra.mxu0 %v103
    %125 = vmatpush.msra.mxu0 %v102
    %126 = vmatpush.msra.mxu0 %v101
    %127 = vmatpush.msra.mxu0 %v100
    %128 = vmatpush.msra.mxu0 %v99
    %129 = vmatpush.msra.mxu0 %v98
    %130 = vmatpush.msra.mxu0 %v97
    %131 = vmatpush.msra.mxu0 %v96
    %132 = vmatmul.f32.gmra.mxu0 %v95
    %v133 = vpop.f32.mrf.mxu0
    %v134 = vadd.f32 %v114, %v133
    %135 = vdwg.mxu0
    %v136 = vtanh.pop %v134
    %v137 = vld [vmem:[#allocation4] sm:$0xff]
    %v138 = vld [vmem:[#allocation4 + $0x8] sm:$0xff]
    %v139 = vld [vmem:[#allocation4 + $0x10] sm:$0xff]
    %v140 = vld [vmem:[#allocation4 + $0x18] sm:$0xff]
    %v141 = vld [vmem:[#allocation4 + $0x20] sm:$0xff]
    %v142 = vld [vmem:[#allocation4 + $0x28] sm:$0xff]
    %v143 = vld [vmem:[#allocation4 + $0x30] sm:$0xff]
    %v144 = vld [vmem:[#allocation4 + $0x38] sm:$0xff]
    %v145 = vld [vmem:[#allocation4 + $0x40] sm:$0xff]
    %v146 = vld [vmem:[#allocation4 + $0x48] sm:$0xff]
    %v147 = vld [vmem:[#allocation4 + $0x50] sm:$0xff]
    %v148 = vld [vmem:[#allocation4 + $0x58] sm:$0xff]
    %v149 = vld [vmem:[#allocation4 + $0x60] sm:$0xff]
    %v150 = vld [vmem:[#allocation4 + $0x68] sm:$0xff]
    %v151 = vld [vmem:[#allocation4 + $0x70] sm:$0xff]
    %v152 = vld [vmem:[#allocation4 + $0x78] sm:$0xff]
    %v153 = vld [vmem:[%s8] sm:$0x1]
    %v155 = vperm.slane %v153, 0
    %157 = vmatpush.msra.mxu0 %v152
    %158 = vmatpush.msra.mxu0 %v151
    %159 = vmatpush.msra.mxu0 %v150
    %160 = vmatpush.msra.mxu0 %v149
    %161 = vmatpush.msra.mxu0 %v148
    %162 = vmatpush.msra.mxu0 %v147
    %163 = vmatpush.msra.mxu0 %v146
    %164 = vmatpush.msra.mxu0 %v145
    %165 = vmatpush.msra.mxu0 %v144
    %166 = vmatpush.msra.mxu0 %v143
    %167 = vmatpush.msra.mxu0 %v142
    %168 = vmatpush.msra.mxu0 %v141
    %169 = vmatpush.msra.mxu0 %v140
    %170 = vmatpush.msra.mxu0 %v139
    %171 = vmatpush.msra.mxu0 %v138
    %172 = vmatpush.msra.mxu0 %v137
    %173 = vmatmul.f32.gmra.mxu0 %v136
    %v174 = vpop.f32.mrf.mxu0
    %v175 = vadd.f32 %v155, %v174
    %176 = vdwg.mxu0
    %v177 = vld [vmem:[%s2] sm:$0x1]
    %v178 = vrcp.pop %v177
    %v179 = vmul.f32 %v177, %v178
    %v180 = vsub.f32 1.0, %v179
    %v181 = vmul.f32 %v178, %v180
    %v182 = vadd.f32 %v178, %v181
    %vm183 = vweird.f32 %v177
    %vm184 = vweird.f32 %v178
    %vm185 = vmor %vm183, %vm184
    %v186 = vsel %vm185, %v178, %v182
    %v187 = vand.u32 2147483647, %v177
    %vm188 = vcmp.eq.f32.partialorder %v187, 8.507059e+37
    %v189 = vand.u32 %v177, 2147483648
    %v190 = vor.u32 1.1754944e-38, %v189
    %v191 = vsel %vm188, %v190, %v186
    %v192 = vmul.f32 1.0, %v191
    %v193 = vlog2.pop %v177
    %v194 = vmul.f32 %v193, 0.6931472
    %vm195 = vcmask 1040384
    %v196 = vsel %vm195, %v194, 0.0
    %197 = vadd.xlane.f32.xlu0 %v196
    %v198 = vpop.xlane.xlu0 %197
    %v199 = vld [vmem:[%s1] sm:$0xff]
    %v200 = vlaneseq
    %v201 = vand.u32 %v200, 127
    %v202 = vsub.f32 %v199, %v175
    %vm203 = vcmp.lt.s32.totalorder %v201, 4
    %v204 = vmul.f32 %v202, %v202
    %v206 = vperm.slane %v192, 0
    %v208 = vmul.f32 %v204, %v206
    %v209 = vsel %vm203, %v208, 0.0
    %210 = vadd.xlane.f32.xlu0 %v209
    %v211 = vpop.xlane.xlu0 %210
    %v212 = vadd.f32 %v211, 7.351508
    %v213 = vperm.slane %v198, 0
    %v214 = vadd.f32 %v212, %v213
    %v215 = vmul.f32 %v214, -0.5
    %vm216 = vcmp.eq.s32.totalorder %v201, 5
    %v217 = vsel %vm216, %v215, %v175
    %218 = vst [vmem:[%s9] sm:$0xff] %v217
    // Predicated region
    $region46: #{actor_critic_evaluate.1} parent=1 // pred_check
      _
    $region47: #{actor_critic_evaluate.1} parent=1 // pred_check_branch
      %220 = sbr.rel (0) target = $region49
    $region48: #{actor_critic_evaluate.1} parent=1 // pred_region
      _
    $region49: #{actor_critic_evaluate.1} parent=1 // pred_fallthru
      _
    // Predicated region
    $region50: #{actor_critic_evaluate.1} parent=1 // pred_check
      _
    $region51: #{actor_critic_evaluate.1} parent=1 // pred_check_branch
      %222 = sbr.rel (0) target = $region53
    $region52: #{actor_critic_evaluate.1} parent=1 // pred_region
      _
    $region53: #{actor_critic_evaluate.1} parent=1 // pred_fallthru
      _
    %223 = vsyncpa [#allocation3], 1
    %224 = vsyncpa [#allocation5], 1

</llo_original>
